<compile_context>
chip_gen: v7x
topology: tpu7x:2x2x1
jax: 0.10.0
libtpu: 0.0.40
codegen_flags: <defaults>
</compile_context>

<pallas_src>
import jax
import jax.numpy as jnp
from jax.experimental import pallas as pl
from jax.experimental.pallas import tpu as pltpu


# ----------------------------- model dimensions ------------------------------
STOCH_DIM = 16      # stoch_dim
DETER_DIM = 32      # deter_dim
ACTION_DIM = 8      # action_dim
OBS_EMBED_DIM = 64  # obs_embed_dim
HIDDEN = 32         # hidden_units
MIN_STDDEV = 0.1
BATCH = 8

S, A, D, E, H = STOCH_DIM, ACTION_DIM, DETER_DIM, OBS_EMBED_DIM, HIDDEN

# ------------------------- weight-slab row layout -----------------------------
# One (256, 128) f32 slab; every block starts at a sublane-aligned row (mult. of
# 8) and at lane column 0. All padding MUST be zero (see INVARIANT above).
ROW_W_SA = 0                 #   0: (S+A=24, H=32)      fc_state_action
ROW_GRU  = ROW_W_SA + S + A  #  24: (H+D=64, 128)       fused GRU [r | z | Win | Whn]
ROW_W1   = ROW_GRU + H + D   #  88: (D+E=96, 2H=64)     fused first layers [prior | posterior]
ROW_W2   = ROW_W1 + D + E    # 184: (2H=64, 4S=64)      block-diag heads [pm|ps|qm|qs]
ROW_BIAS = ROW_W2 + 2 * H    # 248: 4 bias rows (b_sa, b_gru_fused, b_1, b_2)
SLAB_ROWS = 256

# --------------------------- input-slab lane layout ---------------------------
IN_SA = 0        # cols  0:24  = [stoch | action]   (cols 24:32 are zero pad)
IN_DETER = 32    # cols 32:64  = deter
IN_OBS = 64      # cols 64:128 = obs_embed
IN_WIDTH = 128

# --------------------------- output-slab lane layout --------------------------
OUT_WIDTH = 128  # [p_mean(16) | p_std(16) | q_mean(16) | q_std(16) | deter(32) | pad(32)]


def _softplus(x):
    # numerically-stable softplus (matches F.softplus default beta=1)
    return jnp.maximum(x, 0.0) + jnp.log1p(jnp.exp(-jnp.abs(x)))


def _dot(a, b):
    return jnp.dot(a, b, preferred_element_type=jnp.float32)


# --------------------------------- kernel ------------------------------------
def rssm_kernel(x_ref, w_ref, out_ref):
    B = out_ref.shape[0]

    # One input DMA feeds all activations; static ref views are free.
    sa = x_ref[:, IN_SA:IN_SA + S + A]        # (B, 24) concat([stoch, action])
    h = x_ref[:, IN_DETER:IN_DETER + D]       # (B, 32) deter
    o = x_ref[:, IN_OBS:IN_OBS + E]           # (B, 64) obs embedding

    # All biases in one unmasked (8, 128) vreg load (rows 248:256).
    bias = w_ref[ROW_BIAS:ROW_BIAS + 8, :]    # (8, 128)
    b_sa = bias[0]                            # (128,) lanes 32: are zero
    b_gru = bias[1]                           # (128,) [b_ir+b_hr | b_iz+b_hz | b_in | b_hn]
    b_1 = bias[2]                             # (128,) lanes 64: are zero
    b_2 = bias[3]                             # (128,) lanes 64: are zero

    # 1) fc_state_action: relu(Linear(concat([stoch, action])))
    #    full-128-lane RHS (padding cols are zero -> unmasked weight read).
    hidden = jnp.maximum(
        _dot(sa, w_ref[ROW_W_SA:ROW_W_SA + S + A, :]) + b_sa, 0.0)[:, 0:H]   # (B, 32)

    # 2) GRUCell(hidden, deter) — ONE fused (B,64)x(64,128) matmul.
    gates = _dot(jnp.concatenate([hidden, h], axis=-1),
                 w_ref[ROW_GRU:ROW_GRU + H + D, :]) + b_gru                  # (B, 128)
    rz = jax.nn.sigmoid(gates[:, 0:2 * D])
    r = rz[:, 0:D]
    z = rz[:, D:2 * D]
    n = jnp.tanh(gates[:, 2 * D:3 * D] + r * gates[:, 3 * D:4 * D])
    h_new = (1.0 - z) * n + z * h                                            # (B, 32)

    # 3) fused first layers of prior & posterior MLPs — ONE (B,96)x(96,128) matmul.
    #    hid2 = [p_hid | q_hid]
    hid2 = jnp.maximum(
        _dot(jnp.concatenate([h_new, o], axis=-1),
             w_ref[ROW_W1:ROW_W1 + D + E, :]) + b_1, 0.0)[:, 0:2 * H]        # (B, 64)

    # 4) fused heads (block-diagonal): [p_mean | p_std | q_mean | q_std]
    heads = (_dot(hid2, w_ref[ROW_W2:ROW_W2 + 2 * H, :]) + b_2)[:, 0:4 * S]  # (B, 64)

    # softplus + min_stddev only on the std lanes 16:32 and 48:64 (bit test).
    lane = jax.lax.broadcasted_iota(jnp.int32, heads.shape, 1)
    is_std = ((lane >> 4) & 1) == 1
    heads = jnp.where(is_std, _softplus(heads) + MIN_STDDEV, heads)

    # single lane-dense (B, 128) unmasked store
    pad = jnp.zeros((B, OUT_WIDTH - 4 * S - D), jnp.float32)
    out_ref[...] = jnp.concatenate([heads, h_new, pad], axis=-1)

    # TODO(synk): td.Independent(td.Normal(...)) sampling/log_prob has no Pallas
    # equivalent here; the kernel returns the distribution parameters (mean, std).


# -------------------------------- wrapper -------------------------------------
@jax.jit
def rssm_forward(stoch, action, deter, obs_embed, weight_slab):
    B = stoch.shape[0]
    # one concatenate builds the lane-dense (B, 128) input slab
    x = jnp.concatenate(
        [stoch, action, jnp.zeros((B, IN_DETER - S - A), jnp.float32),
         deter, obs_embed], axis=-1)

    vmem = pl.BlockSpec(memory_space=pltpu.MemorySpace.VMEM)
    packed = pl.pallas_call(
        rssm_kernel,
        out_shape=jax.ShapeDtypeStruct((B, OUT_WIDTH), jnp.float32),
        in_specs=[vmem, vmem],
        out_specs=vmem,
    )(x, weight_slab)

    prior_mean = packed[:, 0:S]
    prior_std = packed[:, S:2 * S]
    post_mean = packed[:, 2 * S:3 * S]
    post_std = packed[:, 3 * S:4 * S]
    deter_next = packed[:, 4 * S:4 * S + D]
    return prior_mean, prior_std, post_mean, post_std, deter_next


# --------------------------- parameter construction ---------------------------
def make_params(key):
    shapes = [
        ("w_sa_s", (S, H)), ("w_sa_a", (A, H)), ("b_sa", (1, H)),
        ("w_ir", (H, D)), ("w_iz", (H, D)), ("w_in", (H, D)),
        ("w_hr", (D, D)), ("w_hz", (D, D)), ("w_hn", (D, D)),
        ("b_ir", (1, D)), ("b_iz", (1, D)), ("b_in", (1, D)),
        ("b_hr", (1, D)), ("b_hz", (1, D)), ("b_hn", (1, D)),
        ("w_p1", (D, H)), ("b_p1", (1, H)),
        ("w_p2m", (H, S)), ("b_p2m", (1, S)),
        ("w_p2s", (H, S)), ("b_p2s", (1, S)),
        ("w_q1d", (D, H)), ("w_q1e", (E, H)), ("b_q1", (1, H)),
        ("w_q2m", (H, S)), ("b_q2m", (1, S)),
        ("w_q2s", (H, S)), ("b_q2s", (1, S)),
    ]
    params = []
    keys = jax.random.split(key, len(shapes))
    for k, (name, shp) in zip(keys, shapes):
        fan_in = shp[0] if shp[0] > 1 else shp[1]
        scale = 1.0 / jnp.sqrt(jnp.float32(fan_in))
        params.append(scale * jax.random.normal(k, shp, dtype=jnp.float32))
    return params


def pack_params(p):
    """Pack the 28 PyTorch-layout parameter tensors into one (256, 128) f32 slab.

    INVARIANT: the kernel depends on every un-set region of this slab being
    exactly zero (off-diagonal head blocks, Win/Whn cross rows, prior column of
    the obs rows, lane padding, bias padding). Do not build the slab any other
    way (e.g. from a donated/uninitialized buffer).
    """
    (w_sa_s, w_sa_a, b_sa,
     w_ir, w_iz, w_in_, w_hr, w_hz, w_hn,
     b_ir, b_iz, b_in_, b_hr, b_hz, b_hn,
     w_p1, b_p1, w_p2m, b_p2m, w_p2s, b_p2s,
     w_q1d, w_q1e, b_q1, w_q2m, b_q2m, w_q2s, b_q2s) = p

    slab = jnp.zeros((SLAB_ROWS, 128), jnp.float32)

    def put(slab, row, col, blk):
        return slab.at[row:row + blk.shape[0], col:col + blk.shape[1]].set(blk)

    # fc_state_action  (concat([stoch, action]) -> hidden)
    slab = put(slab, ROW_W_SA, 0, w_sa_s)
    slab = put(slab, ROW_W_SA + S, 0, w_sa_a)

    # fused GRU weight, (H+D=64, 128): columns [r-fused | z-fused | Win | Whn]
    #   rows 0:H   ('hidden' input part): [Wir | Wiz | Win |  0  ]
    #   rows H:H+D ('deter' hidden part): [Whr | Whz |  0  | Whn ]
    slab = put(slab, ROW_GRU, 0 * D, w_ir)
    slab = put(slab, ROW_GRU, 1 * D, w_iz)
    slab = put(slab, ROW_GRU, 2 * D, w_in_)
    slab = put(slab, ROW_GRU + H, 0 * D, w_hr)
    slab = put(slab, ROW_GRU + H, 1 * D, w_hz)
    slab = put(slab, ROW_GRU + H, 3 * D, w_hn)

    # fused first layers, (D+E=96, 2H=64): columns 0:H prior, H:2H posterior
    #   rows 0:D   (h_new part): [W_p1 | W_q1(deter part)]
    #   rows D:D+E (obs part):   [  0  | W_q1(obs part)  ]
    slab = put(slab, ROW_W1, 0, w_p1)
    slab = put(slab, ROW_W1, H, w_q1d)
    slab = put(slab, ROW_W1 + D, H, w_q1e)

    # fused heads, block-diagonal: rows 0:H prior hidden, H:2H posterior hidden
    slab = put(slab, ROW_W2, 0 * S, w_p2m)
    slab = put(slab, ROW_W2, 1 * S, w_p2s)
    slab = put(slab, ROW_W2 + H, 2 * S, w_q2m)
    slab = put(slab, ROW_W2 + H, 3 * S, w_q2s)

    # biases
    slab = put(slab, ROW_BIAS + 0, 0, b_sa)
    # fused GRU bias: [b_ir+b_hr | b_iz+b_hz | b_in | b_hn]
    slab = put(slab, ROW_BIAS + 1, 0 * D, b_ir + b_hr)
    slab = put(slab, ROW_BIAS + 1, 1 * D, b_iz + b_hz)
    slab = put(slab, ROW_BIAS + 1, 2 * D, b_in_)
    slab = put(slab, ROW_BIAS + 1, 3 * D, b_hn)
    slab = put(slab, ROW_BIAS + 2, 0, b_p1)
    slab = put(slab, ROW_BIAS + 2, H, b_q1)
    slab = put(slab, ROW_BIAS + 3, 0 * S, b_p2m)
    slab = put(slab, ROW_BIAS + 3, 1 * S, b_p2s)
    slab = put(slab, ROW_BIAS + 3, 2 * S, b_q2m)
    slab = put(slab, ROW_BIAS + 3, 3 * S, b_q2s)
    return slab


# ----------------------------- pure-JAX reference ------------------------------
def rssm_reference(stoch, action, deter, obs, p):
    (w_sa_s, w_sa_a, b_sa,
     w_ir, w_iz, w_in_, w_hr, w_hz, w_hn,
     b_ir, b_iz, b_in_, b_hr, b_hz, b_hn,
     w_p1, b_p1, w_p2m, b_p2m, w_p2s, b_p2s,
     w_q1d, w_q1e, b_q1, w_q2m, b_q2m, w_q2s, b_q2s) = p

    hidden = jax.nn.relu(stoch @ w_sa_s + action @ w_sa_a + b_sa)
    r = jax.nn.sigmoid(hidden @ w_ir + b_ir + deter @ w_hr + b_hr)
    z = jax.nn.sigmoid(hidden @ w_iz + b_iz + deter @ w_hz + b_hz)
    n = jnp.tanh(hidden @ w_in_ + b_in_ + r * (deter @ w_hn + b_hn))
    h_new = (1.0 - z) * n + z * deter

    p_hid = jax.nn.relu(h_new @ w_p1 + b_p1)
    p_mean = p_hid @ w_p2m + b_p2m
    p_std = jax.nn.softplus(p_hid @ w_p2s + b_p2s) + MIN_STDDEV

    q_hid = jax.nn.relu(h_new @ w_q1d + obs @ w_q1e + b_q1)
    q_mean = q_hid @ w_q2m + b_q2m
    q_std = jax.nn.softplus(q_hid @ w_q2s + b_q2s) + MIN_STDDEV
    return p_mean, p_std, q_mean, q_std, h_new


# ---------------------------------- main ---------------------------------------
if __name__ == "__main__":
    key = jax.random.PRNGKey(0)
    k_s, k_a, k_d, k_o, k_p = jax.random.split(key, 5)

    stoch = jax.random.normal(k_s, (BATCH, STOCH_DIM), dtype=jnp.float32)
    action = jax.random.normal(k_a, (BATCH, ACTION_DIM), dtype=jnp.float32)
    deter = jax.random.normal(k_d, (BATCH, DETER_DIM), dtype=jnp.float32)
    obs_embed = jax.random.normal(k_o, (BATCH, OBS_EMBED_DIM), dtype=jnp.float32)

    params = make_params(k_p)
    weight_slab = pack_params(params)

    outs = rssm_forward(stoch, action, deter, obs_embed, weight_slab)
    outs = jax.block_until_ready(outs)

    # sanity check against a pure-JAX reference using the unpacked weights
    refs = rssm_reference(stoch, action, deter, obs_embed, params)
    for got, want in zip(outs, refs):
        assert got.shape == want.shape and got.dtype == want.dtype
        assert jnp.allclose(got, want, atol=1e-4, rtol=1e-4)

    print("KERNEL_OK")
</pallas_src>

<mosaic_0001>
module attributes {stable_mosaic.version = 11 : i64} {
  func.func @rssm_kernel(%arg0: memref<8x128xf32, #tpu.memory_space<vmem>>, %arg1: memref<256x128xf32, #tpu.memory_space<vmem>>, %arg2: memref<8x128xf32, #tpu.memory_space<vmem>>) attributes {dimension_semantics = [], scalar_prefetch = 0 : i64, scratch_operands = 0 : i64, tpu.core_type = #tpu.core_type<tc>} {
    %c0 = arith.constant 0 : index
    %c0_0 = arith.constant 0 : index
    %0 = vector.load %arg0[%c0, %c0_0] : memref<8x128xf32, #tpu.memory_space<vmem>>, vector<8x24xf32>
    %c0_1 = arith.constant 0 : index
    %c32 = arith.constant 32 : index
    %1 = vector.load %arg0[%c0_1, %c32] : memref<8x128xf32, #tpu.memory_space<vmem>>, vector<8x32xf32>
    %c0_2 = arith.constant 0 : index
    %c64 = arith.constant 64 : index
    %2 = vector.load %arg0[%c0_2, %c64] : memref<8x128xf32, #tpu.memory_space<vmem>>, vector<8x64xf32>
    %c248 = arith.constant 248 : index
    %c0_3 = arith.constant 0 : index
    %3 = vector.load %arg1[%c248, %c0_3] : memref<256x128xf32, #tpu.memory_space<vmem>>, vector<8x128xf32>
    %4 = vector.extract_strided_slice %3 {offsets = [0, 0], sizes = [1, 128], strides = [1, 1]} : vector<8x128xf32> to vector<1x128xf32>
    %5 = vector.shape_cast %4 : vector<1x128xf32> to vector<128xf32>
    %6 = vector.extract_strided_slice %3 {offsets = [1, 0], sizes = [1, 128], strides = [1, 1]} : vector<8x128xf32> to vector<1x128xf32>
    %7 = vector.shape_cast %6 : vector<1x128xf32> to vector<128xf32>
    %8 = vector.extract_strided_slice %3 {offsets = [2, 0], sizes = [1, 128], strides = [1, 1]} : vector<8x128xf32> to vector<1x128xf32>
    %9 = vector.shape_cast %8 : vector<1x128xf32> to vector<128xf32>
    %10 = vector.extract_strided_slice %3 {offsets = [3, 0], sizes = [1, 128], strides = [1, 1]} : vector<8x128xf32> to vector<1x128xf32>
    %11 = vector.shape_cast %10 : vector<1x128xf32> to vector<128xf32>
    %c0_4 = arith.constant 0 : index
    %c0_5 = arith.constant 0 : index
    %12 = vector.load %arg1[%c0_4, %c0_5] : memref<256x128xf32, #tpu.memory_space<vmem>>, vector<24x128xf32>
    %cst = arith.constant dense<0.000000e+00> : vector<8x128xf32>
    %13 = tpu.matmul %0, %12, %cst {dimension_numbers = #tpu.dot_dimension_numbers<[1], [0], [0], [1], [0, 0, 1, 1], [], []>} : vector<8x24xf32>, vector<24x128xf32>, vector<8x128xf32> -> vector<8x128xf32>
    %14 = vector.shape_cast %5 : vector<128xf32> to vector<1x128xf32>
    %15 = vector.broadcast %14 : vector<1x128xf32> to vector<8x128xf32>
    %16 = arith.addf %13, %15 : vector<8x128xf32>
    %cst_6 = arith.constant 0.000000e+00 : f32
    %17 = vector.broadcast %cst_6 : f32 to vector<8x128xf32>
    %18 = arith.maximumf %16, %17 : vector<8x128xf32>
    %19 = vector.extract_strided_slice %18 {offsets = [0, 0], sizes = [8, 32], strides = [1, 1]} : vector<8x128xf32> to vector<8x32xf32>
    %20 = tpu.concatenate %19, %1 in 1 : vector<8x32xf32>, vector<8x32xf32> -> vector<8x64xf32>
    %c24 = arith.constant 24 : index
    %c0_7 = arith.constant 0 : index
    %21 = vector.load %arg1[%c24, %c0_7] : memref<256x128xf32, #tpu.memory_space<vmem>>, vector<64x128xf32>
    %cst_8 = arith.constant dense<0.000000e+00> : vector<8x128xf32>
    %22 = tpu.matmul %20, %21, %cst_8 {dimension_numbers = #tpu.dot_dimension_numbers<[1], [0], [0], [1], [0, 0, 1, 1], [], []>} : vector<8x64xf32>, vector<64x128xf32>, vector<8x128xf32> -> vector<8x128xf32>
    %23 = vector.shape_cast %7 : vector<128xf32> to vector<1x128xf32>
    %24 = vector.broadcast %23 : vector<1x128xf32> to vector<8x128xf32>
    %25 = arith.addf %22, %24 : vector<8x128xf32>
    %26 = vector.extract_strided_slice %25 {offsets = [0, 0], sizes = [8, 64], strides = [1, 1]} : vector<8x128xf32> to vector<8x64xf32>
    %27 = arith.negf %26 : vector<8x64xf32>
    %28 = math.exp %27 : vector<8x64xf32>
    %cst_9 = arith.constant 1.000000e+00 : f32
    %29 = vector.broadcast %cst_9 : f32 to vector<8x64xf32>
    %30 = arith.addf %29, %28 : vector<8x64xf32>
    %31 = arith.divf %29, %30 : vector<8x64xf32>
    %32 = vector.extract_strided_slice %31 {offsets = [0, 0], sizes = [8, 32], strides = [1, 1]} : vector<8x64xf32> to vector<8x32xf32>
    %33 = vector.extract_strided_slice %31 {offsets = [0, 32], sizes = [8, 32], strides = [1, 1]} : vector<8x64xf32> to vector<8x32xf32>
    %34 = vector.extract_strided_slice %25 {offsets = [0, 64], sizes = [8, 32], strides = [1, 1]} : vector<8x128xf32> to vector<8x32xf32>
    %35 = vector.extract_strided_slice %25 {offsets = [0, 96], sizes = [8, 32], strides = [1, 1]} : vector<8x128xf32> to vector<8x32xf32>
    %36 = arith.mulf %32, %35 : vector<8x32xf32>
    %37 = arith.addf %34, %36 : vector<8x32xf32>
    %38 = math.tanh %37 : vector<8x32xf32>
    %cst_10 = arith.constant 1.000000e+00 : f32
    %39 = vector.broadcast %cst_10 : f32 to vector<8x32xf32>
    %40 = arith.subf %39, %33 : vector<8x32xf32>
    %41 = arith.mulf %40, %38 : vector<8x32xf32>
    %42 = arith.mulf %33, %1 : vector<8x32xf32>
    %43 = arith.addf %41, %42 : vector<8x32xf32>
    %44 = tpu.concatenate %43, %2 in 1 : vector<8x32xf32>, vector<8x64xf32> -> vector<8x96xf32>
    %c88 = arith.constant 88 : index
    %c0_11 = arith.constant 0 : index
    %45 = vector.load %arg1[%c88, %c0_11] : memref<256x128xf32, #tpu.memory_space<vmem>>, vector<96x128xf32>
    %cst_12 = arith.constant dense<0.000000e+00> : vector<8x128xf32>
    %46 = tpu.matmul %44, %45, %cst_12 {dimension_numbers = #tpu.dot_dimension_numbers<[1], [0], [0], [1], [0, 0, 1, 1], [], []>} : vector<8x96xf32>, vector<96x128xf32>, vector<8x128xf32> -> vector<8x128xf32>
    %47 = vector.shape_cast %9 : vector<128xf32> to vector<1x128xf32>
    %48 = vector.broadcast %47 : vector<1x128xf32> to vector<8x128xf32>
    %49 = arith.addf %46, %48 : vector<8x128xf32>
    %cst_13 = arith.constant 0.000000e+00 : f32
    %50 = vector.broadcast %cst_13 : f32 to vector<8x128xf32>
    %51 = arith.maximumf %49, %50 : vector<8x128xf32>
    %52 = vector.extract_strided_slice %51 {offsets = [0, 0], sizes = [8, 64], strides = [1, 1]} : vector<8x128xf32> to vector<8x64xf32>
    %c184 = arith.constant 184 : index
    %c0_14 = arith.constant 0 : index
    %53 = vector.load %arg1[%c184, %c0_14] : memref<256x128xf32, #tpu.memory_space<vmem>>, vector<64x128xf32>
    %cst_15 = arith.constant dense<0.000000e+00> : vector<8x128xf32>
    %54 = tpu.matmul %52, %53, %cst_15 {dimension_numbers = #tpu.dot_dimension_numbers<[1], [0], [0], [1], [0, 0, 1, 1], [], []>} : vector<8x64xf32>, vector<64x128xf32>, vector<8x128xf32> -> vector<8x128xf32>
    %55 = vector.shape_cast %11 : vector<128xf32> to vector<1x128xf32>
    %56 = vector.broadcast %55 : vector<1x128xf32> to vector<8x128xf32>
    %57 = arith.addf %54, %56 : vector<8x128xf32>
    %58 = vector.extract_strided_slice %57 {offsets = [0, 0], sizes = [8, 64], strides = [1, 1]} : vector<8x128xf32> to vector<8x64xf32>
    %59 = tpu.iota {dimensions = array<i32: 1>} : vector<8x64xi32>
    %c4_i32 = arith.constant 4 : i32
    %60 = vector.broadcast %c4_i32 : i32 to vector<8x64xi32>
    %61 = arith.shrsi %59, %60 : vector<8x64xi32>
    %c1_i32 = arith.constant 1 : i32
    %62 = vector.broadcast %c1_i32 : i32 to vector<8x64xi32>
    %63 = arith.andi %61, %62 : vector<8x64xi32>
    %c1_i32_16 = arith.constant 1 : i32
    %64 = vector.broadcast %c1_i32_16 : i32 to vector<8x64xi32>
    %65 = arith.cmpi eq, %63, %64 : vector<8x64xi32>
    %cst_17 = arith.constant 0.000000e+00 : f32
    %66 = vector.broadcast %cst_17 : f32 to vector<8x64xf32>
    %67 = arith.maximumf %58, %66 : vector<8x64xf32>
    %68 = math.absf %58 : vector<8x64xf32>
    %cst_18 = arith.constant 0.000000e+00 : f32
    %69 = vector.broadcast %cst_18 : f32 to vector<8x64xf32>
    %70 = arith.subf %69, %68 : vector<8x64xf32>
    %71 = math.exp %70 : vector<8x64xf32>
    %72 = math.log1p %71 : vector<8x64xf32>
    %73 = arith.addf %67, %72 : vector<8x64xf32>
    %cst_19 = arith.constant 1.000000e-01 : f32
    %74 = vector.broadcast %cst_19 : f32 to vector<8x64xf32>
    %75 = arith.addf %73, %74 : vector<8x64xf32>
    %76 = arith.select %65, %75, %58 : vector<8x64xi1>, vector<8x64xf32>
    %cst_20 = arith.constant 0.000000e+00 : f32
    %77 = vector.broadcast %cst_20 : f32 to vector<8x32xf32>
    %78 = tpu.concatenate %76, %43, %77 in 1 : vector<8x64xf32>, vector<8x32xf32>, vector<8x32xf32> -> vector<8x128xf32>
    %c0_21 = arith.constant 0 : index
    %c0_22 = arith.constant 0 : index
    %79 = vector.load %arg2[%c0_21, %c0_22] : memref<8x128xf32, #tpu.memory_space<vmem>>, vector<8x128xf32>
    tpu.vector_store %arg2[%c0_21, %c0_22], %78 {strides = array<i32>} : memref<8x128xf32, #tpu.memory_space<vmem>>, vector<8x128xf32>,
    return
  }
}

</mosaic_0001>

<llo_original>
// kernel: rssm_forward.1
$region0: #{rssm_forward.1}
  #allocation0 [shape = 'u32[]', space=smem, size = 0x4, offset = 0x4, fixed_abs, tag = 'smem constant byte address 0x4 - core index']
  #allocation1 [shape = 'u32[144,128]{1,0:T(1,128)}', space=vmem, size = 0x12000, scoped, tag = 'internal scratch']
  %s0 = inlined_call_operand.vmem [shape: f32[8,128], index: 0, kind: input, shape index: {}]
  %s1 = inlined_call_operand.hbm [shape: f32[256,128], index: 1, kind: input, shape index: {}]
  %s2 = inlined_call_operand.vmem [shape: f32[8,128], index: 2, kind: output, shape index: {}]
  %s3 = sld [smem:[#allocation0]]
  $region22: #{rssm_forward.1} parent=0
    _
  %s5 = ssub.s32 1, %s3
  %s6 = scalar_select 0, %s5, %s3
  $region1: #{rssm_forward.1} parent=0
    #allocation2 [shape = 'u8[131072]{0}', space=vmem, size = 0x20000, scoped, tag = 'input window, operand 1, single buffered']
    #allocation3 [shape = 's32[1]{0}', space=sflag, size = 0x4, scoped, tag = 'scoped memory for rssm_forward.1']
    %7 = vsyncpa [#allocation3], 0
    // Predicated region
    $region2: #{rssm_forward.1} parent=1 // pred_check
      _
    $region3: #{rssm_forward.1} parent=1 // pred_check_branch
      %9 = sbr.rel (0) target = $region5
    $region4: #{rssm_forward.1} parent=1 // pred_region
      _
    $region5: #{rssm_forward.1} parent=1 // pred_fallthru
      _
    // Predicated region
    $region6: #{rssm_forward.1} parent=1 // pred_check
      _
    $region7: #{rssm_forward.1} parent=1 // pred_check_branch
      %11 = sbr.rel (0) target = $region9
    $region8: #{rssm_forward.1} parent=1 // pred_region
      %s13 = ssub.s32 4096, 4096
      %14 = vsyncadd [#allocation3], %s13
      %s15 = sshll.u32 [#allocation2], 4
      %s16 = int_to_ptr.vmem [resolvable:$true] %s15
      %21 = dma.hbm_to_vmem [thread:$0]  %s1, 4096, %s16, [#allocation3], 128, 128, 8
    $region9: #{rssm_forward.1} parent=1 // pred_fallthru
      _
    // Predicated region
    $region10: #{rssm_forward.1} parent=1 // pred_check
      _
    $region11: #{rssm_forward.1} parent=1 // pred_check_branch
      %23 = sbr.rel (0) target = $region13
    $region12: #{rssm_forward.1} parent=1 // pred_region
      %24 = dma.done [#allocation3], 4096
    $region13: #{rssm_forward.1} parent=1 // pred_fallthru
      _
    %v25 = vld [vmem:[%s0] sm:$0xff]
    %v26 = vld [vmem:[#allocation2 + $0xf8] sm:$0xff]
    %v27 = vld [vmem:[#allocation2] sm:$0xff]
    %v28 = vld [vmem:[#allocation2 + $0x8] sm:$0xff]
    %v29 = vld [vmem:[#allocation2 + $0x10] sm:$0xff]
    %v30 = vlaneseq
    %v31 = vshrl.u32 %v30, 7
    %v32 = vsub.s32 0, %v31
    %v33 = vrot.slane %v26, %v32
    %vm34 = vcmask 195584
    %v36 = vsel %vm34, %v25, 0
    %38 = vmatprep.subr.mxu0 0.0
    %39 = vmatpush1.msra.mxu0 %v27
    %40 = vmatprep.subr.mxu0 0.0
    %41 = vmatpush1.msra.mxu0 %v28
    %42 = vmatprep.subr.mxu0 0.0
    %43 = vmatpush1.msra.mxu0 %v29
    %44 = vmatprep.subr.mxu0 0.0
    %45 = vmatpush1.msra.mxu0 0.0
    %46 = vmatprep.subr.mxu0 0.0
    %47 = vmatpush1.msra.mxu0 0.0
    %48 = vmatprep.subr.mxu0 0.0
    %49 = vmatpush1.msra.mxu0 0.0
    %50 = vmatprep.subr.mxu0 0.0
    %51 = vmatpush1.msra.mxu0 0.0
    %52 = vmatprep.subr.mxu0 0.0
    %53 = vmatpush1.msra.mxu0 0.0
    %54 = vmatprep.subr.mxu0 0.0
    %55 = vmatpush1.msra.mxu0 0.0
    %56 = vmatprep.subr.mxu0 0.0
    %57 = vmatpush1.msra.mxu0 0.0
    %58 = vmatprep.subr.mxu0 0.0
    %59 = vmatpush1.msra.mxu0 0.0
    %60 = vmatprep.subr.mxu0 0.0
    %61 = vmatpush1.msra.mxu0 0.0
    %62 = vmatprep.subr.mxu0 0.0
    %63 = vmatpush1.msra.mxu0 0.0
    %64 = vmatprep.subr.mxu0 0.0
    %65 = vmatpush1.msra.mxu0 0.0
    %66 = vmatprep.subr.mxu0 0.0
    %67 = vmatpush1.msra.mxu0 0.0
    %68 = vmatprep.subr.mxu0 0.0
    %69 = vmatpush1.msra.mxu0 0.0
    %70 = vmatprep.subr.mxu0 0.0
    %71 = vmatpush1.msra.mxu0 0.0
    %72 = vmatprep.subr.mxu0 0.0
    %73 = vmatpush1.msra.mxu0 0.0
    %74 = vmatprep.subr.mxu0 0.0
    %75 = vmatpush1.msra.mxu0 0.0
    %76 = vmatprep.subr.mxu0 0.0
    %77 = vmatpush1.msra.mxu0 0.0
    %78 = vmatprep.subr.mxu0 0.0
    %79 = vmatpush1.msra.mxu0 0.0
    %80 = vmatprep.subr.mxu0 0.0
    %81 = vmatpush1.msra.mxu0 0.0
    %82 = vmatprep.subr.mxu0 0.0
    %83 = vmatpush1.msra.mxu0 0.0
    %84 = vmatprep.subr.mxu0 0.0
    %85 = vmatpush1.msra.mxu0 0.0
    %86 = vmatprep.subr.mxu0 0.0
    %87 = vmatpush1.msra.mxu0 0.0
    %88 = vmatprep.subr.mxu0 0.0
    %89 = vmatpush1.msra.mxu0 0.0
    %90 = vmatprep.subr.mxu0 0.0
    %91 = vmatpush1.msra.mxu0 0.0
    %92 = vmatprep.subr.mxu0 0.0
    %93 = vmatpush1.msra.mxu0 0.0
    %94 = vmatprep.subr.mxu0 0.0
    %95 = vmatpush1.msra.mxu0 0.0
    %96 = vmatprep.subr.mxu0 0.0
    %97 = vmatpush1.msra.mxu0 0.0
    %98 = vmatprep.subr.mxu0 0.0
    %99 = vmatpush1.msra.mxu0 0.0
    %100 = vmatprep.subr.mxu0 0.0
    %101 = vmatpush1.msra.mxu0 0.0
    %102 = vmatprep.mubr.f32.mxu0 0.0
    %103 = vmatmul.mubr.f32.gmra.mrb[0].mxu0 %v36
    %v104 = vpop.f32.mrb[0].mxu0
    %v105 = vadd.f32 %v33, %v104
    %v106 = vpop.f32.mrb[0].mxu0
    %107 = vdwg.mxu0
    %v108 = vmax.f32 %v105, 0.0
    %vm109 = vcmask 261120
    %v110 = vsel %vm109, %v108, %v25
    %v111 = vld [vmem:[#allocation2 + $0x18] sm:$0xff]
    %v112 = vld [vmem:[#allocation2 + $0x20] sm:$0xff]
    %v113 = vld [vmem:[#allocation2 + $0x28] sm:$0xff]
    %v114 = vld [vmem:[#allocation2 + $0x30] sm:$0xff]
    %v115 = vld [vmem:[#allocation2 + $0x38] sm:$0xff]
    %v116 = vld [vmem:[#allocation2 + $0x40] sm:$0xff]
    %v117 = vld [vmem:[#allocation2 + $0x48] sm:$0xff]
    %v118 = vld [vmem:[#allocation2 + $0x50] sm:$0xff]
    %v119 = vlaneseq
    %v120 = vshrl.u32 %v119, 7
    %v121 = vsub.s32 1, %v120
    %v122 = vrot.slane %v26, %v121
    %vm123 = vcmask 523264
    %v125 = vsel %vm123, %v110, 0
    %127 = vmatprep.subr.mxu0 0.0
    %128 = vmatpush1.msra.mxu0 %v111
    %129 = vmatprep.subr.mxu0 0.0
    %130 = vmatpush1.msra.mxu0 %v112
    %131 = vmatprep.subr.mxu0 0.0
    %132 = vmatpush1.msra.mxu0 %v113
    %133 = vmatprep.subr.mxu0 0.0
    %134 = vmatpush1.msra.mxu0 %v114
    %135 = vmatprep.subr.mxu0 0.0
    %136 = vmatpush1.msra.mxu0 %v115
    %137 = vmatprep.subr.mxu0 0.0
    %138 = vmatpush1.msra.mxu0 %v116
    %139 = vmatprep.subr.mxu0 0.0
    %140 = vmatpush1.msra.mxu0 %v117
    %141 = vmatprep.subr.mxu0 0.0
    %142 = vmatpush1.msra.mxu0 %v118
    %143 = vmatprep.subr.mxu0 0.0
    %144 = vmatpush1.msra.mxu0 0.0
    %145 = vmatprep.subr.mxu0 0.0
    %146 = vmatpush1.msra.mxu0 0.0
    %147 = vmatprep.subr.mxu0 0.0
    %148 = vmatpush1.msra.mxu0 0.0
    %149 = vmatprep.subr.mxu0 0.0
    %150 = vmatpush1.msra.mxu0 0.0
    %151 = vmatprep.subr.mxu0 0.0
    %152 = vmatpush1.msra.mxu0 0.0
    %153 = vmatprep.subr.mxu0 0.0
    %154 = vmatpush1.msra.mxu0 0.0
    %155 = vmatprep.subr.mxu0 0.0
    %156 = vmatpush1.msra.mxu0 0.0
    %157 = vmatprep.subr.mxu0 0.0
    %158 = vmatpush1.msra.mxu0 0.0
    %159 = vmatprep.subr.mxu0 0.0
    %160 = vmatpush1.msra.mxu0 0.0
    %161 = vmatprep.subr.mxu0 0.0
    %162 = vmatpush1.msra.mxu0 0.0
    %163 = vmatprep.subr.mxu0 0.0
    %164 = vmatpush1.msra.mxu0 0.0
    %165 = vmatprep.subr.mxu0 0.0
    %166 = vmatpush1.msra.mxu0 0.0
    %167 = vmatprep.subr.mxu0 0.0
    %168 = vmatpush1.msra.mxu0 0.0
    %169 = vmatprep.subr.mxu0 0.0
    %170 = vmatpush1.msra.mxu0 0.0
    %171 = vmatprep.subr.mxu0 0.0
    %172 = vmatpush1.msra.mxu0 0.0
    %173 = vmatprep.subr.mxu0 0.0
    %174 = vmatpush1.msra.mxu0 0.0
    %175 = vmatprep.subr.mxu0 0.0
    %176 = vmatpush1.msra.mxu0 0.0
    %177 = vmatprep.subr.mxu0 0.0
    %178 = vmatpush1.msra.mxu0 0.0
    %179 = vmatprep.subr.mxu0 0.0
    %180 = vmatpush1.msra.mxu0 0.0
    %181 = vmatprep.subr.mxu0 0.0
    %182 = vmatpush1.msra.mxu0 0.0
    %183 = vmatprep.subr.mxu0 0.0
    %184 = vmatpush1.msra.mxu0 0.0
    %185 = vmatprep.subr.mxu0 0.0
    %186 = vmatpush1.msra.mxu0 0.0
    %187 = vmatprep.subr.mxu0 0.0
    %188 = vmatpush1.msra.mxu0 0.0
    %189 = vmatprep.subr.mxu0 0.0
    %190 = vmatpush1.msra.mxu0 0.0
    %191 = vmatprep.mubr.f32.mxu0 0.0
    %192 = vmatmul.mubr.f32.gmra.mrb[0].mxu0 %v125
    %v193 = vpop.f32.mrb[0].mxu0
    %v194 = vadd.f32 %v122, %v193
    %v195 = vpop.f32.mrb[0].mxu0
    %196 = vdwg.mxu0
    %v197 = vxor.u32 %v194, 2147483648
    %v198 = vmul.f32 %v197, 1.442695
    %v199 = vpow.pop %v198
    %v200 = vadd.f32 %v199, 1.0
    %v201 = vrcp.pop %v200
    %v202 = vmul.f32 1.0, %v201
    %204 = vrot.lane.b32.xlu0 %v194, 32
    %v205 = vpop.permute.xlu0 %204
    %v207 = vmul.f32 %v202, %v205
    %209 = vrot.lane.b32.xlu0 %v207, 64
    %v210 = vpop.permute.xlu0 %209
    %v212 = vadd.f32 %v194, %v210
    %v213 = vtanh.pop %v212
    %v214 = vsub.f32 1.0, %v202
    %216 = vrot.lane.b32.xlu0 %v213, 96
    %v217 = vpop.permute.xlu0 %216
    %v219 = vmul.f32 %v214, %v217
    %v220 = vmul.f32 %v202, %v25
    %v221 = vadd.f32 %v219, %v220
    %223 = vrot.lane.b32.xlu0 %v221, 96
    %v224 = vpop.permute.xlu0 %223
    %226 = vrot.lane.b32.xlu0 %v25, 96
    %v227 = vpop.permute.xlu0 %226
    %v229 = vsel %vm109, %v224, %v227
    %v230 = vld [vmem:[#allocation2 + $0x58] sm:$0xff]
    %v231 = vld [vmem:[#allocation2 + $0x60] sm:$0xff]
    %v232 = vld [vmem:[#allocation2 + $0x68] sm:$0xff]
    %v233 = vld [vmem:[#allocation2 + $0x70] sm:$0xff]
    %v234 = vld [vmem:[#allocation2 + $0x78] sm:$0xff]
    %v235 = vld [vmem:[#allocation2 + $0x80] sm:$0xff]
    %v236 = vld [vmem:[#allocation2 + $0x88] sm:$0xff]
    %v237 = vld [vmem:[#allocation2 + $0x90] sm:$0xff]
    %v238 = vld [vmem:[#allocation2 + $0x98] sm:$0xff]
    %v239 = vld [vmem:[#allocation2 + $0xa0] sm:$0xff]
    %v240 = vld [vmem:[#allocation2 + $0xa8] sm:$0xff]
    %v241 = vld [vmem:[#allocation2 + $0xb0] sm:$0xff]
    %v242 = vlaneseq
    %v243 = vshrl.u32 %v242, 7
    %v244 = vsub.s32 2, %v243
    %v245 = vrot.slane %v26, %v244
    %vm246 = vcmask 785408
    %v248 = vsel %vm246, %v229, 0
    %250 = vmatprep.subr.mxu0 0.0
    %251 = vmatpush1.msra.mxu0 %v230
    %252 = vmatprep.subr.mxu0 0.0
    %253 = vmatpush1.msra.mxu0 %v231
    %254 = vmatprep.subr.mxu0 0.0
    %255 = vmatpush1.msra.mxu0 %v232
    %256 = vmatprep.subr.mxu0 0.0
    %257 = vmatpush1.msra.mxu0 %v233
    %258 = vmatprep.subr.mxu0 0.0
    %259 = vmatpush1.msra.mxu0 %v234
    %260 = vmatprep.subr.mxu0 0.0
    %261 = vmatpush1.msra.mxu0 %v235
    %262 = vmatprep.subr.mxu0 0.0
    %263 = vmatpush1.msra.mxu0 %v236
    %264 = vmatprep.subr.mxu0 0.0
    %265 = vmatpush1.msra.mxu0 %v237
    %266 = vmatprep.subr.mxu0 0.0
    %267 = vmatpush1.msra.mxu0 %v238
    %268 = vmatprep.subr.mxu0 0.0
    %269 = vmatpush1.msra.mxu0 %v239
    %270 = vmatprep.subr.mxu0 0.0
    %271 = vmatpush1.msra.mxu0 %v240
    %272 = vmatprep.subr.mxu0 0.0
    %273 = vmatpush1.msra.mxu0 %v241
    %274 = vmatprep.subr.mxu0 0.0
    %275 = vmatpush1.msra.mxu0 0.0
    %276 = vmatprep.subr.mxu0 0.0
    %277 = vmatpush1.msra.mxu0 0.0
    %278 = vmatprep.subr.mxu0 0.0
    %279 = vmatpush1.msra.mxu0 0.0
    %280 = vmatprep.subr.mxu0 0.0
    %281 = vmatpush1.msra.mxu0 0.0
    %282 = vmatprep.subr.mxu0 0.0
    %283 = vmatpush1.msra.mxu0 0.0
    %284 = vmatprep.subr.mxu0 0.0
    %285 = vmatpush1.msra.mxu0 0.0
    %286 = vmatprep.subr.mxu0 0.0
    %287 = vmatpush1.msra.mxu0 0.0
    %288 = vmatprep.subr.mxu0 0.0
    %289 = vmatpush1.msra.mxu0 0.0
    %290 = vmatprep.subr.mxu0 0.0
    %291 = vmatpush1.msra.mxu0 0.0
    %292 = vmatprep.subr.mxu0 0.0
    %293 = vmatpush1.msra.mxu0 0.0
    %294 = vmatprep.subr.mxu0 0.0
    %295 = vmatpush1.msra.mxu0 0.0
    %296 = vmatprep.subr.mxu0 0.0
    %297 = vmatpush1.msra.mxu0 0.0
    %298 = vmatprep.subr.mxu0 0.0
    %299 = vmatpush1.msra.mxu0 0.0
    %300 = vmatprep.subr.mxu0 0.0
    %301 = vmatpush1.msra.mxu0 0.0
    %302 = vmatprep.subr.mxu0 0.0
    %303 = vmatpush1.msra.mxu0 0.0
    %304 = vmatprep.subr.mxu0 0.0
    %305 = vmatpush1.msra.mxu0 0.0
    %306 = vmatprep.subr.mxu0 0.0
    %307 = vmatpush1.msra.mxu0 0.0
    %308 = vmatprep.subr.mxu0 0.0
    %309 = vmatpush1.msra.mxu0 0.0
    %310 = vmatprep.subr.mxu0 0.0
    %311 = vmatpush1.msra.mxu0 0.0
    %312 = vmatprep.subr.mxu0 0.0
    %313 = vmatpush1.msra.mxu0 0.0
    %314 = vmatprep.mubr.f32.mxu0 0.0
    %315 = vmatmul.mubr.f32.gmra.mrb[0].mxu0 %v248
    %v316 = vpop.f32.mrb[0].mxu0
    %v317 = vadd.f32 %v245, %v316
    %v318 = vpop.f32.mrb[0].mxu0
    %319 = vdwg.mxu0
    %v320 = vmax.f32 %v317, 0.0
    %v321 = vld [vmem:[#allocation2 + $0xb8] sm:$0xff]
    %v322 = vld [vmem:[#allocation2 + $0xc0] sm:$0xff]
    %v323 = vld [vmem:[#allocation2 + $0xc8] sm:$0xff]
    %v324 = vld [vmem:[#allocation2 + $0xd0] sm:$0xff]
    %v325 = vld [vmem:[#allocation2 + $0xd8] sm:$0xff]
    %v326 = vld [vmem:[#allocation2 + $0xe0] sm:$0xff]
    %v327 = vld [vmem:[#allocation2 + $0xe8] sm:$0xff]
    %v328 = vld [vmem:[#allocation2 + $0xf0] sm:$0xff]
    %v329 = vlaneseq
    %v330 = vshrl.u32 %v329, 7
    %v331 = vsub.s32 3, %v330
    %v332 = vrot.slane %v26, %v331
    %v334 = vsel %vm123, %v320, 0
    %336 = vmatprep.subr.mxu0 0.0
    %337 = vmatpush1.msra.mxu0 %v321
    %338 = vmatprep.subr.mxu0 0.0
    %339 = vmatpush1.msra.mxu0 %v322
    %340 = vmatprep.subr.mxu0 0.0
    %341 = vmatpush1.msra.mxu0 %v323
    %342 = vmatprep.subr.mxu0 0.0
    %343 = vmatpush1.msra.mxu0 %v324
    %344 = vmatprep.subr.mxu0 0.0
    %345 = vmatpush1.msra.mxu0 %v325
    %346 = vmatprep.subr.mxu0 0.0
    %347 = vmatpush1.msra.mxu0 %v326
    %348 = vmatprep.subr.mxu0 0.0
    %349 = vmatpush1.msra.mxu0 %v327
    %350 = vmatprep.subr.mxu0 0.0
    %351 = vmatpush1.msra.mxu0 %v328
    %352 = vmatprep.subr.mxu0 0.0
    %353 = vmatpush1.msra.mxu0 0.0
    %354 = vmatprep.subr.mxu0 0.0
    %355 = vmatpush1.msra.mxu0 0.0
    %356 = vmatprep.subr.mxu0 0.0
    %357 = vmatpush1.msra.mxu0 0.0
    %358 = vmatprep.subr.mxu0 0.0
    %359 = vmatpush1.msra.mxu0 0.0
    %360 = vmatprep.subr.mxu0 0.0
    %361 = vmatpush1.msra.mxu0 0.0
    %362 = vmatprep.subr.mxu0 0.0
    %363 = vmatpush1.msra.mxu0 0.0
    %364 = vmatprep.subr.mxu0 0.0
    %365 = vmatpush1.msra.mxu0 0.0
    %366 = vmatprep.subr.mxu0 0.0
    %367 = vmatpush1.msra.mxu0 0.0
    %368 = vmatprep.subr.mxu0 0.0
    %369 = vmatpush1.msra.mxu0 0.0
    %370 = vmatprep.subr.mxu0 0.0
    %371 = vmatpush1.msra.mxu0 0.0
    %372 = vmatprep.subr.mxu0 0.0
    %373 = vmatpush1.msra.mxu0 0.0
    %374 = vmatprep.subr.mxu0 0.0
    %375 = vmatpush1.msra.mxu0 0.0
    %376 = vmatprep.subr.mxu0 0.0
    %377 = vmatpush1.msra.mxu0 0.0
    %378 = vmatprep.subr.mxu0 0.0
    %379 = vmatpush1.msra.mxu0 0.0
    %380 = vmatprep.subr.mxu0 0.0
    %381 = vmatpush1.msra.mxu0 0.0
    %382 = vmatprep.subr.mxu0 0.0
    %383 = vmatpush1.msra.mxu0 0.0
    %384 = vmatprep.subr.mxu0 0.0
    %385 = vmatpush1.msra.mxu0 0.0
    %386 = vmatprep.subr.mxu0 0.0
    %387 = vmatpush1.msra.mxu0 0.0
    %388 = vmatprep.subr.mxu0 0.0
    %389 = vmatpush1.msra.mxu0 0.0
    %390 = vmatprep.subr.mxu0 0.0
    %391 = vmatpush1.msra.mxu0 0.0
    %392 = vmatprep.subr.mxu0 0.0
    %393 = vmatpush1.msra.mxu0 0.0
    %394 = vmatprep.subr.mxu0 0.0
    %395 = vmatpush1.msra.mxu0 0.0
    %396 = vmatprep.subr.mxu0 0.0
    %397 = vmatpush1.msra.mxu0 0.0
    %398 = vmatprep.subr.mxu0 0.0
    %399 = vmatpush1.msra.mxu0 0.0
    %400 = vmatprep.mubr.f32.mxu0 0.0
    %401 = vmatmul.mubr.f32.gmra.mrb[0].mxu0 %v334
    %v402 = vpop.f32.mrb[0].mxu0
    %v403 = vadd.f32 %v332, %v402
    %v404 = vpop.f32.mrb[0].mxu0
    %405 = vdwg.mxu0
    %v406 = vlaneseq
    %v407 = vand.u32 %v406, 127
    %v408 = vshra.s32 %v407, 4
    %v409 = vand.u32 %v408, 1
    %vm410 = vcmp.eq.s32.totalorder %v409, 1
    %v411 = vmax.f32 %v403, 0.0
    %v412 = vand.u32 2147483647, %v403
    %v413 = vsub.f32 0.0, %v412
    %v414 = vmul.f32 %v413, 1.442695
    %v415 = vpow.pop %v414
    %v416 = vadd.f32 %v415, 1.0
    %v417 = vlog2.pop %v416
    %v418 = vmul.f32 %v417, 0.6931472
    %v419 = vmul.f32 -0.5, %v415
    %v420 = vadd.f32 %v419, 1.0
    %v421 = vmul.f32 %v420, %v415
    %v422 = vand.u32 2147483647, %v415
    %vm423 = vcmp.lt.f32.partialorder %v422, 0.0004427343
    %v424 = vsel %vm423, %v421, %v418
    %v425 = vadd.f32 %v411, %v424
    %v426 = vadd.f32 %v425, 0.1
    %v427 = vsel %vm410, %v426, %v403
    %428 = vrot.lane.b32.xlu0 %v221, 32
    %v429 = vpop.permute.xlu0 %428
    %v431 = vsel %vm123, %v427, %v429
    %v432 = vsel %vm246, %v431, 0.0
    %433 = vst [vmem:[%s2] sm:$0xff] %v432
    // Predicated region
    $region14: #{rssm_forward.1} parent=1 // pred_check
      _
    $region15: #{rssm_forward.1} parent=1 // pred_check_branch
      %435 = sbr.rel (0) target = $region17
    $region16: #{rssm_forward.1} parent=1 // pred_region
      _
    $region17: #{rssm_forward.1} parent=1 // pred_fallthru
      _
    // Predicated region
    $region18: #{rssm_forward.1} parent=1 // pred_check
      _
    $region19: #{rssm_forward.1} parent=1 // pred_check_branch
      %437 = sbr.rel (0) target = $region21
    $region20: #{rssm_forward.1} parent=1 // pred_region
      _
    $region21: #{rssm_forward.1} parent=1 // pred_fallthru
      _
    %438 = vsyncpa [#allocation3], 1

</llo_original>
